<compile_context>
chip_gen: v5e
topology: v5e:2x2
jax: 0.10.0
libtpu: 0.0.40
codegen_flags: <defaults>
</compile_context>

<pallas_src>
import jax
import jax.numpy as jnp
from jax.experimental import pallas as pl
from jax.experimental.pallas import tpu as pltpu


# ---------------------------------------------------------------------------
# Kernels
# ---------------------------------------------------------------------------

def _dense_kernel_single(x_ref, w_ref, b_ref, o_ref):
    """Whole-problem kernel (no grid): x @ W^T + b on the MXU."""
    acc = jax.lax.dot_general(
        x_ref[...], w_ref[...],
        dimension_numbers=(((1,), (1,)), ((), ())),   # contract x.K with w.K
        preferred_element_type=jnp.float32)
    o_ref[...] = (acc + b_ref[...]).astype(o_ref.dtype)


def _dense_kernel_tiled(x_ref, w_ref, b_ref, o_ref, acc_ref):
    """Tiled kernel: pure MXU accumulate on the K axis; bias-add + cast + store
    happen once per output tile in the finalize branch."""
    k = pl.program_id(2)

    @pl.when(k == 0)
    def _():
        acc_ref[...] = jnp.zeros_like(acc_ref)

    acc_ref[...] += jax.lax.dot_general(
        x_ref[...], w_ref[...],
        dimension_numbers=(((1,), (1,)), ((), ())),   # contract x.K with w.K
        preferred_element_type=jnp.float32)

    @pl.when(k == pl.num_programs(2) - 1)
    def _():
        o_ref[...] = (acc_ref[...] + b_ref[...]).astype(o_ref.dtype)


# ---------------------------------------------------------------------------
# Wrapper
# ---------------------------------------------------------------------------

def _pick_tile(dim, candidates):
    """Largest MXU/vreg-aligned candidate that evenly divides `dim`; fall back
    to the full extent (a full-extent block is always a legal BlockSpec)."""
    for c in candidates:
        if dim >= c and dim % c == 0:
            return c
    return dim


def dense_forward(x, weight, bias):
    """Equivalent of torch.nn.Linear(input_dim, output_dim)(x)[..., None, None].

    x:      (batch, input_dim)        float32
    weight: (output_dim, input_dim)   PyTorch layout, used as-is (no transpose)
    bias:   (output_dim,)
    returns (batch, output_dim, 1, 1)
    """
    batch, input_dim = x.shape
    output_dim, k_dim = weight.shape
    assert k_dim == input_dim, (weight.shape, x.shape)

    b2d = bias.reshape(1, output_dim)   # broadcastable bias row

    # MXU-shaped tiles: 256-multiples preferred (v6e/v7x 2x256x256 MXU),
    # 128 for v5e-friendly fallback; full extent for small/ragged dims.
    tm = _pick_tile(batch, (512, 256, 128))
    tn = _pick_tile(output_dim, (512, 256, 128))
    tk = _pick_tile(input_dim, (512, 256, 128))
    grid = (batch // tm, output_dim // tn, input_dim // tk)

    cost = pl.CostEstimate(
        flops=2 * batch * input_dim * output_dim,
        transcendentals=0,
        bytes_accessed=4 * (batch * input_dim + output_dim * input_dim
                            + batch * output_dim + output_dim))

    if grid == (1, 1, 1):
        # Tiny problem: single shot, no grid => no per-step pipeline overhead.
        # TODO(synk): at demo scale this op is best fused into its consumer;
        # kept as a standalone kernel per the module boundary.
        out = pl.pallas_call(
            _dense_kernel_single,
            out_shape=jax.ShapeDtypeStruct((batch, output_dim), x.dtype),
            cost_estimate=cost,
        )(x, weight, b2d)
    else:
        out = pl.pallas_call(
            _dense_kernel_tiled,
            out_shape=jax.ShapeDtypeStruct((batch, output_dim), x.dtype),
            grid_spec=pltpu.PrefetchScalarGridSpec(
                num_scalar_prefetch=0,
                grid=grid,
                in_specs=[
                    pl.BlockSpec((tm, tk), lambda i, j, k: (i, k)),   # x
                    pl.BlockSpec((tn, tk), lambda i, j, k: (j, k)),   # W (out,in)
                    pl.BlockSpec((1, tn), lambda i, j, k: (0, j)),    # bias row
                ],
                out_specs=pl.BlockSpec((tm, tn), lambda i, j, k: (i, j)),
                scratch_shapes=[pltpu.VMEM((tm, tn), jnp.float32)],
            ),
            compiler_params=pltpu.CompilerParams(
                dimension_semantics=("parallel", "parallel", "arbitrary"),
                # Explicit budget; safely inside v7x's 64 MiB physical VMEM.
                vmem_limit_bytes=32 * 1024 * 1024),
            cost_estimate=cost,
        )(x, weight, b2d)

    # PyTorch: self.dense(x)[..., None, None]  (pure reshape, no data movement)
    return out[..., None, None]


def init_dense_params(key, input_dim, output_dim):
    """Deterministic init mimicking nn.Linear's default U(-1/sqrt(in), 1/sqrt(in))."""
    k_w, k_b = jax.random.split(key)
    bound = 1.0 / jnp.sqrt(jnp.float32(input_dim))
    weight = jax.random.uniform(
        k_w, (output_dim, input_dim), jnp.float32, minval=-bound, maxval=bound)
    bias = jax.random.uniform(
        k_b, (output_dim,), jnp.float32, minval=-bound, maxval=bound)
    return weight, bias


if __name__ == "__main__":
    key = jax.random.PRNGKey(0)
    k_x, k_p, k_x2, k_p2 = jax.random.split(key, 4)

    # --- small demo shape consistent with the module (single-block path) ---
    batch, input_dim, output_dim = 8, 32, 16
    x = jax.random.normal(k_x, (batch, input_dim), jnp.float32)
    weight, bias = init_dense_params(k_p, input_dim, output_dim)

    out = jax.block_until_ready(dense_forward(x, weight, bias))
    ref = (x @ weight.T + bias)[..., None, None]
    assert out.shape == (batch, output_dim, 1, 1), out.shape
    assert jnp.allclose(out, ref, atol=1e-5, rtol=1e-5)

    # --- larger shape exercising the tiled (M, N, K) grid path ---
    b2, d_in2, d_out2 = 256, 1024, 384          # grid = (1, 3, 2)
    x2 = jax.random.normal(k_x2, (b2, d_in2), jnp.float32)
    w2, bi2 = init_dense_params(k_p2, d_in2, d_out2)

    out2 = jax.block_until_ready(dense_forward(x2, w2, bi2))
    ref2 = (x2 @ w2.T + bi2)[..., None, None]
    assert out2.shape == (b2, d_out2, 1, 1), out2.shape
    assert jnp.allclose(out2, ref2, atol=1e-3, rtol=1e-3)

    print("KERNEL_OK")
</pallas_src>

<mosaic_0001>
module attributes {stable_mosaic.version = 11 : i64} {
  func.func @_dense_kernel_single(%arg0: memref<8x32xf32, #tpu.memory_space<vmem>>, %arg1: memref<16x32xf32, #tpu.memory_space<vmem>>, %arg2: memref<1x16xf32, #tpu.memory_space<vmem>>, %arg3: memref<8x16xf32, #tpu.memory_space<vmem>>) attributes {dimension_semantics = [], scalar_prefetch = 0 : i64, scratch_operands = 0 : i64, tpu.core_type = #tpu.core_type<tc>} {
    %c0 = arith.constant 0 : index
    %c0_0 = arith.constant 0 : index
    %0 = vector.load %arg0[%c0, %c0_0] : memref<8x32xf32, #tpu.memory_space<vmem>>, vector<8x32xf32>
    %c0_1 = arith.constant 0 : index
    %c0_2 = arith.constant 0 : index
    %1 = vector.load %arg1[%c0_1, %c0_2] : memref<16x32xf32, #tpu.memory_space<vmem>>, vector<16x32xf32>
    %cst = arith.constant dense<0.000000e+00> : vector<8x16xf32>
    %2 = tpu.matmul %0, %1, %cst {dimension_numbers = #tpu.dot_dimension_numbers<[1], [1], [0], [0], [0, 0, 1, 0], [], []>} : vector<8x32xf32>, vector<16x32xf32>, vector<8x16xf32> -> vector<8x16xf32>
    %c0_3 = arith.constant 0 : index
    %c0_4 = arith.constant 0 : index
    %3 = vector.load %arg2[%c0_3, %c0_4] : memref<1x16xf32, #tpu.memory_space<vmem>>, vector<1x16xf32>
    %4 = vector.broadcast %3 : vector<1x16xf32> to vector<8x16xf32>
    %5 = arith.addf %2, %4 : vector<8x16xf32>
    %c0_5 = arith.constant 0 : index
    %c0_6 = arith.constant 0 : index
    %6 = vector.load %arg3[%c0_5, %c0_6] : memref<8x16xf32, #tpu.memory_space<vmem>>, vector<8x16xf32>
    tpu.vector_store %arg3[%c0_5, %c0_6], %5 {strides = array<i32>} : memref<8x16xf32, #tpu.memory_space<vmem>>, vector<8x16xf32>,
    return
  }
}

</mosaic_0001>

<llo_original>
// kernel: tpu_custom_call.1
$region0: #{tpu_custom_call.1}
  #allocation0 [shape = 'u32[]', space=smem, size = 0x4, offset = 0x4, fixed_abs, tag = 'smem constant byte address 0x4 - core index']
  #allocation1 [shape = 'u32[72,128]{1,0:T(1,128)}', space=vmem, size = 0x9000, scoped, tag = 'internal scratch']
  %s0 = inlined_call_operand.hbm [shape: f32[8,32], index: 0, kind: input, shape index: {}]
  %s1 = inlined_call_operand.hbm [shape: f32[16,32], index: 1, kind: input, shape index: {}]
  %s2 = inlined_call_operand.vmem [shape: f32[1,16], index: 2, kind: input, shape index: {}]
  %s3 = inlined_call_operand.hbm [shape: f32[8,16], index: 3, kind: output, shape index: {}]
  %s4 = sld [smem:[#allocation0]]
  $region30: #{tpu_custom_call.1} parent=0
    _
  %s6 = ssub.s32 1, %s4
  %s7 = scalar_select 0, %s6, %s4
  $region1: #{tpu_custom_call.1} parent=0
    #allocation2 [shape = 'u8[4096]{0}', space=vmem, size = 0x1000, scoped, tag = 'input window, operand 0, single buffered']
    #allocation3 [shape = 's32[1]{0}', space=sflag, size = 0x4, scoped, tag = 'scoped memory for tpu_custom_call.1']
    #allocation4 [shape = 's32[1]{0}', space=sflag, size = 0x4, scoped, tag = 'scoped memory for tpu_custom_call.1']
    #allocation5 [shape = 'u8[8192]{0}', space=vmem, size = 0x2000, scoped, tag = 'input window, operand 1, single buffered']
    #allocation6 [shape = 's32[1]{0}', space=sflag, size = 0x4, scoped, tag = 'scoped memory for tpu_custom_call.1']
    #allocation7 [shape = 'u8[4096]{0}', space=vmem, size = 0x1000, scoped, tag = 'output window, operand 0, single buffered']
    %8 = vsyncpa [#allocation3], 0
    %9 = vsyncpa [#allocation6], 0
    %10 = vsyncpa [#allocation4], 0
    // Predicated region
    $region2: #{tpu_custom_call.1} parent=1 // pred_check
      _
    $region3: #{tpu_custom_call.1} parent=1 // pred_check_branch
      %12 = sbr.rel (0) target = $region5
    $region4: #{tpu_custom_call.1} parent=1 // pred_region
      %14 = vsyncadd [#allocation3], 0
      %s16 = sshll.u32 %s0, 4
      %s17 = int_to_ptr.hbm [resolvable:$true] %s16
      %s18 = sshll.u32 [#allocation2], 4
      %s19 = int_to_ptr.vmem [resolvable:$true] %s18
      %21 = dma.hbm_to_vmem [thread:$0]  %s17, 128, %s19, [#allocation3]
    $region5: #{tpu_custom_call.1} parent=1 // pred_fallthru
      _
    // Predicated region
    $region6: #{tpu_custom_call.1} parent=1 // pred_check
      _
    $region7: #{tpu_custom_call.1} parent=1 // pred_check_branch
      %23 = sbr.rel (0) target = $region9
    $region8: #{tpu_custom_call.1} parent=1 // pred_region
      %25 = vsyncadd [#allocation6], 0
      %s26 = sshll.u32 %s1, 4
      %s27 = int_to_ptr.hbm [resolvable:$true] %s26
      %s28 = sshll.u32 [#allocation5], 4
      %s29 = int_to_ptr.vmem [resolvable:$true] %s28
      %34 = dma.hbm_to_vmem [thread:$0]  %s27, 256, %s29, [#allocation6], 128, 128, 8
    $region9: #{tpu_custom_call.1} parent=1 // pred_fallthru
      _
    // Predicated region
    $region10: #{tpu_custom_call.1} parent=1 // pred_check
      _
    $region11: #{tpu_custom_call.1} parent=1 // pred_check_branch
      %36 = sbr.rel (0) target = $region13
    $region12: #{tpu_custom_call.1} parent=1 // pred_region
      _
    $region13: #{tpu_custom_call.1} parent=1 // pred_fallthru
      _
    // Predicated region
    $region14: #{tpu_custom_call.1} parent=1 // pred_check
      _
    $region15: #{tpu_custom_call.1} parent=1 // pred_check_branch
      %38 = sbr.rel (0) target = $region17
    $region16: #{tpu_custom_call.1} parent=1 // pred_region
      %40 = dma.done [#allocation3], 128
    $region17: #{tpu_custom_call.1} parent=1 // pred_fallthru
      _
    // Predicated region
    $region18: #{tpu_custom_call.1} parent=1 // pred_check
      _
    $region19: #{tpu_custom_call.1} parent=1 // pred_check_branch
      %42 = sbr.rel (0) target = $region21
    $region20: #{tpu_custom_call.1} parent=1 // pred_region
      %44 = dma.done [#allocation6], 256
    $region21: #{tpu_custom_call.1} parent=1 // pred_fallthru
      _
    %v45 = vld [vmem:[#allocation2] sm:$0xff]
    %v46 = vld [vmem:[#allocation5] sm:$0xff]
    %v47 = vld [vmem:[#allocation5 + $0x8] sm:$0xff]
    %v48 = vld [vmem:[%s2] sm:$0x1]
    %v50 = vperm.slane %v48, 0
    %vm52 = vcmask 261120
    %v54 = vsel %vm52, %v45, 0
    %v57 = vsel %vm52, %v46, 0
    %v60 = vsel %vm52, %v47, 0
    %62 = vmatpush.xpose.msra.mxu0 0.0
    %63 = vmatpush.xpose.msra.mxu0 0.0
    %64 = vmatpush.xpose.msra.mxu0 0.0
    %65 = vmatpush.xpose.msra.mxu0 0.0
    %66 = vmatpush.xpose.msra.mxu0 0.0
    %67 = vmatpush.xpose.msra.mxu0 0.0
    %68 = vmatpush.xpose.msra.mxu0 0.0
    %69 = vmatpush.xpose.msra.mxu0 0.0
    %70 = vmatpush.xpose.msra.mxu0 0.0
    %71 = vmatpush.xpose.msra.mxu0 0.0
    %72 = vmatpush.xpose.msra.mxu0 0.0
    %73 = vmatpush.xpose.msra.mxu0 0.0
    %74 = vmatpush.xpose.msra.mxu0 0.0
    %75 = vmatpush.xpose.msra.mxu0 0.0
    %76 = vmatpush.xpose.msra.mxu0 %v60
    %77 = vmatpush.xpose.msra.mxu0 %v57
    %78 = vmatmul.f32.gmra.mxu0 %v54
    %v79 = vpop.f32.mrf.mxu0
    %v80 = vadd.f32 %v50, %v79
    %81 = vdwg.mxu0
    %vm82 = vcmask 130048
    %83 = vst.msk [vmem:[#allocation7] sm:$0xff] %vm82, %v80
    // Predicated region
    $region22: #{tpu_custom_call.1} parent=1 // pred_check
      _
    $region23: #{tpu_custom_call.1} parent=1 // pred_check_branch
      %85 = sbr.rel (0) target = $region25
    $region24: #{tpu_custom_call.1} parent=1 // pred_region
      %87 = vsyncadd [#allocation4], 0
      %s89 = sshll.u32 [#allocation7], 4
      %s90 = int_to_ptr.vmem [resolvable:$true] %s89
      %s91 = sshll.u32 %s3, 4
      %s92 = int_to_ptr.hbm [resolvable:$true] %s91
      %94 = dma.vmem_to_hbm [thread:$0]  %s90, 128, %s92, [#allocation4]
    $region25: #{tpu_custom_call.1} parent=1 // pred_fallthru
      _
    // Predicated region
    $region26: #{tpu_custom_call.1} parent=1 // pred_check
      _
    $region27: #{tpu_custom_call.1} parent=1 // pred_check_branch
      %96 = sbr.rel (0) target = $region29
    $region28: #{tpu_custom_call.1} parent=1 // pred_region
      %98 = dma.done [#allocation4], 128
    $region29: #{tpu_custom_call.1} parent=1 // pred_fallthru
      _
    %99 = vsyncpa [#allocation3], 1
    %100 = vsyncpa [#allocation6], 1
    %101 = vsyncpa [#allocation4], 1

</llo_original>
